<compile_context>
chip_gen: v7x
topology: tpu7x:2x2x1
jax: 0.10.0
libtpu: 0.0.40
codegen_flags: <defaults>
</compile_context>

<pallas_src>
from functools import partial

import jax
import jax.numpy as jnp
from jax import lax
from jax.experimental import pallas as pl
from jax.experimental.pallas import tpu as pltpu

LANES = 1024                            # lane-dense fallback width
DEFAULT_BLOCK_BYTES = 4 * 1024 * 1024   # ~4 MiB f32 tiles for the tiled path
MAX_BLOCK_COLS = 4096                   # cap on lane-dim tile (multiple of 128)
TILED_VMEM_LIMIT = 32 * 1024 * 1024     # 2x in + 2x out 4 MiB blocks + headroom


def _vmem_capacity_bytes():
    """Physical VMEM per core, with a conservative (v7x) fallback."""
    try:
        return int(pltpu.get_tpu_info().vmem_capacity_bytes)
    except Exception:
        return 64 * 1024 * 1024


def _as_2d(x):
    """Free (no-copy when possible) 2-D row-major view. Returns (x2d, padded)."""
    n = x.size
    for w in (1024, 512, 256, 128):          # fully lane-dense, no pad
        if n % w == 0:
            return x.reshape(n // w, w), False
    if x.ndim >= 2 and x.shape[-1] >= 128:   # natural shape: no pad, full-dim blocks
        return x.reshape(n // x.shape[-1], x.shape[-1]), False
    # Tiny / awkward last dim: pad the flat vector (zeros: |0| never wins the max).
    pad = (-n) % LANES
    flat = jnp.pad(x.reshape(-1), (0, pad))
    return flat.reshape(-1, LANES), True


def _choose_tiles(A, B, block_bytes):
    """(block_rows, block_cols) targeting ~block_bytes of f32 per (VMEM-padded) tile."""
    bc = B if B <= MAX_BLOCK_COLS else MAX_BLOCK_COLS       # full dim or mult of 128
    bc_pad = -(-bc // 128) * 128                            # lane-padded VMEM width
    br = max(block_bytes // (bc_pad * 4), 8)
    if br >= A:
        br = A                                              # full dim is always legal
    else:
        br = max((br // 8) * 8, 8)                          # sublane multiple
    return br, bc


# ---------------------------------------------------------------------------
# Kernels
# ---------------------------------------------------------------------------
def _fused_kernel(x_ref, o_ref, *, half_scale, b_const, c_const):
    """Whole tensor resident in VMEM: abs-max, one tanh of the max, quantize."""
    x = x_ref[...].astype(jnp.float32)
    m_vec = jnp.max(jnp.abs(x), axis=0, keepdims=True)      # per-lane max |w|
    m = jnp.max(jnp.tanh(m_vec))                             # max|tanh(w)| = tanh(max|w|)
    a = half_scale / m                                       # scalar recip, hoisted
    o_ref[...] = (jnp.round(jnp.tanh(x) * a + b_const) * c_const - 1.0).astype(o_ref.dtype)


def _absmax_kernel(x_ref, pmax_ref, *, n_rows, n_cols, row_ragged, col_ragged):
    """Pass 1 (tiled): per-(row-block, lane) running max of |w|.

    Output block is (8, bc) at (i, 0): resident across the col axis (arbitrary),
    distinct per row-block so the row axis can be 'parallel' (v7x megacore).
    No tanh here -- max|tanh(w)| == tanh(max|w|) is applied later on the scalar.
    """
    j = pl.program_id(1)

    @pl.when(j == 0)
    def _():
        pmax_ref[...] = jnp.zeros_like(pmax_ref)             # |w| >= 0 -> safe init

    x = jnp.abs(x_ref[...].astype(jnp.float32))

    def _acc(v):
        pmax_ref[...] = jnp.maximum(pmax_ref[...],
                                    jnp.max(v, axis=0, keepdims=True))

    if row_ragged or col_ragged:
        i = pl.program_id(0)
        conds = []
        if row_ragged:
            conds.append(i == pl.num_programs(0) - 1)
        if col_ragged:
            conds.append(j == pl.num_programs(1) - 1)
        is_partial = conds[0] if len(conds) == 1 else jnp.logical_or(conds[0], conds[1])

        @pl.when(is_partial)                                  # boundary blocks only
        def _():
            br, bc = x.shape
            mask = None
            if row_ragged:
                mask = (i * br + lax.broadcasted_iota(jnp.int32, x.shape, 0)) < n_rows
            if col_ragged:
                cmask = (j * bc + lax.broadcasted_iota(jnp.int32, x.shape, 1)) < n_cols
                mask = cmask if mask is None else jnp.logical_and(mask, cmask)
            # OOB garbage (possibly NaN/Inf) is selected away before the max.
            _acc(jnp.where(mask, x, 0.0))

        @pl.when(jnp.logical_not(is_partial))
        def _():
            _acc(x)
    else:
        _acc(x)


def _quant_kernel(a_ref, x_ref, o_ref, *, b_const, c_const):
    """Pass 2 (tiled): out = round(tanh(x)*a + b)*c - 1 with a = 0.5*scale/tanh(max|w|)."""
    a = a_ref[0, 0]                                           # SMEM scalar, hoisted
    y = jnp.tanh(x_ref[...].astype(jnp.float32))
    o_ref[...] = (jnp.round(y * a + b_const) * c_const - 1.0).astype(o_ref.dtype)


# ---------------------------------------------------------------------------
# Wrapper
# ---------------------------------------------------------------------------
def weight_quantize(x, w_bits, *, force_tiled=False, block_bytes=DEFAULT_BLOCK_BYTES):
    if w_bits == 32:
        return x
    assert w_bits != 1, "Binary quantization is not supported"

    orig_shape = x.shape
    orig_dtype = x.dtype
    n = x.size
    scale = float(2 ** w_bits - 1)
    half_scale = 0.5 * scale            # numerator of a
    b_const = 0.5 * scale
    c_const = 2.0 / scale

    x2, padded = _as_2d(x)
    A, B = x2.shape

    cap = _vmem_capacity_bytes()
    fused_budget = min(cap // 2, 64 * 1024 * 1024)     # 64 MiB on v5e/v6e, 32 MiB on v7x
    fused_max_elems = fused_budget // 16               # in + out + f32 temps, single-buffered

    if x2.size <= fused_max_elems and not force_tiled:
        # ---- fused single-call path: no grid, no dead double buffers ----
        out2 = pl.pallas_call(
            partial(_fused_kernel, half_scale=half_scale,
                    b_const=b_const, c_const=c_const),
            out_shape=jax.ShapeDtypeStruct((A, B), orig_dtype),
            in_specs=[pl.BlockSpec(memory_space=pltpu.MemorySpace.VMEM)],
            out_specs=pl.BlockSpec(memory_space=pltpu.MemorySpace.VMEM),
            compiler_params=pltpu.CompilerParams(vmem_limit_bytes=fused_budget),
        )(x2)
    else:
        # ---- two-pass tiled path (large weights) ----
        br, bc = _choose_tiles(A, B, block_bytes)
        gr, gc = pl.cdiv(A, br), pl.cdiv(B, bc)
        row_ragged = (A % br) != 0
        col_ragged = (B % bc) != 0

        # Pass 1: per-row-block, per-lane max |w| (row axis parallel -> megacore).
        pmax = pl.pallas_call(
            partial(_absmax_kernel, n_rows=A, n_cols=B,
                    row_ragged=row_ragged, col_ragged=col_ragged),
            out_shape=jax.ShapeDtypeStruct((gr * 8, bc), jnp.float32),
            grid=(gr, gc),
            in_specs=[pl.BlockSpec((br, bc), lambda i, j: (i, j))],
            out_specs=pl.BlockSpec((8, bc), lambda i, j: (i, 0)),
            compiler_params=pltpu.CompilerParams(
                dimension_semantics=("parallel", "arbitrary"),
                vmem_limit_bytes=TILED_VMEM_LIMIT),
        )(x2)

        # Tiny scalar glue: a = 0.5*scale / max|tanh(w)| = 0.5*scale / tanh(max|w|).
        a_scalar = (half_scale / jnp.tanh(jnp.max(pmax))).astype(jnp.float32).reshape(1, 1)

        # Pass 2: pure elementwise quantization; all scalar work hoisted.
        out2 = pl.pallas_call(
            partial(_quant_kernel, b_const=b_const, c_const=c_const),
            out_shape=jax.ShapeDtypeStruct((A, B), orig_dtype),
            grid=(gr, gc),
            in_specs=[
                pl.BlockSpec(memory_space=pltpu.MemorySpace.SMEM),   # scalar a
                pl.BlockSpec((br, bc), lambda i, j: (i, j)),
            ],
            out_specs=pl.BlockSpec((br, bc), lambda i, j: (i, j)),
            compiler_params=pltpu.CompilerParams(
                dimension_semantics=("parallel", "parallel"),
                vmem_limit_bytes=TILED_VMEM_LIMIT),
        )(a_scalar, x2)

    if padded:
        return out2.reshape(-1)[:n].reshape(orig_shape)
    return out2.reshape(orig_shape)


# ---------------------------------------------------------------------------
# Reference + checks
# ---------------------------------------------------------------------------
def _reference(x, w_bits):
    if w_bits == 32:
        return x
    y = jnp.tanh(x)
    y = y / 2.0 / jnp.max(jnp.abs(y)) + 0.5
    scale = float(2 ** w_bits - 1)
    y = jnp.round(y * scale) / scale
    return 2.0 * y - 1.0


def _check(out, ref, scale, name):
    # round() is ULP-sensitive at half-step boundaries, so allow a rare
    # single-quant-step difference; everything else must match tightly.
    diff = jnp.abs(out.astype(jnp.float32) - ref.astype(jnp.float32))
    max_diff = float(jnp.max(diff))
    frac_off = float(jnp.mean((diff > 1e-5).astype(jnp.float32)))
    assert max_diff <= 2.0 / scale + 1e-6, (name, max_diff)
    assert frac_off < 0.01, (name, frac_off)


if __name__ == "__main__":
    key = jax.random.PRNGKey(0)
    w_bits = 8
    scale = float(2 ** w_bits - 1)
    k1, k2, k3, k4 = jax.random.split(key, 4)

    # 1) Small conv weight (OIHW) -> fused single-call path (padded tiny view).
    w = jax.random.normal(k1, (8, 4, 3, 3), dtype=jnp.float32)
    out = jax.block_until_ready(weight_quantize(w, w_bits))
    assert out.shape == w.shape and out.dtype == w.dtype
    _check(out, _reference(w, w_bits), scale, "fused")

    # 2) Ragged natural-shape weight -> tiled path, no padding, row-masked
    #    boundary block (small block_bytes forces a multi-block grid).
    w2 = jax.random.normal(k2, (601, 600), dtype=jnp.float32)
    out2 = jax.block_until_ready(
        weight_quantize(w2, w_bits, force_tiled=True, block_bytes=64 * 1024))
    assert out2.shape == w2.shape and out2.dtype == w2.dtype
    _check(out2, _reference(w2, w_bits), scale, "tiled_natural")

    # 3) Lane-dense (size % 1024 == 0) weight -> tiled path, no masking.
    w3 = jax.random.normal(k3, (256, 512), dtype=jnp.float32)
    out3 = jax.block_until_ready(
        weight_quantize(w3, w_bits, force_tiled=True, block_bytes=64 * 1024))
    assert out3.shape == w3.shape and out3.dtype == w3.dtype
    _check(out3, _reference(w3, w_bits), scale, "tiled_lane_dense")

    # 4) Tiny-last-dim ragged weight -> pad fallback + tiled path.
    w4 = jax.random.normal(k4, (301, 97), dtype=jnp.float32)
    out4 = jax.block_until_ready(
        weight_quantize(w4, w_bits, force_tiled=True, block_bytes=64 * 1024))
    assert out4.shape == w4.shape and out4.dtype == w4.dtype
    _check(out4, _reference(w4, w_bits), scale, "tiled_padded")

    # 5) Passthrough path.
    out32 = jax.block_until_ready(weight_quantize(w, 32))
    assert jnp.array_equal(out32, w)

    print("KERNEL_OK")
</pallas_src>

<mosaic_0001>
module attributes {stable_mosaic.version = 11 : i64} {
  func.func @_fused_kernel(%arg0: memref<1x1024xf32, #tpu.memory_space<vmem>>, %arg1: memref<1x1024xf32, #tpu.memory_space<vmem>>) attributes {dimension_semantics = [], scalar_prefetch = 0 : i64, scratch_operands = 0 : i64, tpu.core_type = #tpu.core_type<tc>} {
    %c0 = arith.constant 0 : index
    %c0_0 = arith.constant 0 : index
    %0 = vector.load %arg0[%c0, %c0_0] : memref<1x1024xf32, #tpu.memory_space<vmem>>, vector<1x1024xf32>
    %1 = math.absf %0 : vector<1x1024xf32>
    %cst = arith.constant dense<0xFF800000> : vector<1024xf32>
    %2 = vector.multi_reduction <maximumf>, %1, %cst [0] : vector<1x1024xf32> to vector<1024xf32>
    %3 = vector.shape_cast %2 : vector<1024xf32> to vector<1x1024xf32>
    %4 = math.tanh %3 : vector<1x1024xf32>
    %5 = vector.shape_cast %4 : vector<1x1024xf32> to vector<1x1x1024xf32>
    %cst_1 = arith.constant dense<0xFF800000> : vector<1xf32>
    %6 = vector.multi_reduction <maximumf>, %5, %cst_1 [1, 2] : vector<1x1x1024xf32> to vector<1xf32>
    %7 = vector.shape_cast %6 : vector<1xf32> to vector<1x1x1xf32>
    %8 = vector.extract %7[0, 0, 0] : f32 from vector<1x1x1xf32>
    %cst_2 = arith.constant 1.275000e+02 : f32
    %9 = arith.divf %cst_2, %8 : f32
    %10 = math.tanh %0 : vector<1x1024xf32>
    %11 = vector.broadcast %9 : f32 to vector<1x1024xf32>
    %12 = arith.mulf %10, %11 : vector<1x1024xf32>
    %cst_3 = arith.constant 1.275000e+02 : f32
    %13 = vector.broadcast %cst_3 : f32 to vector<1x1024xf32>
    %14 = arith.addf %12, %13 : vector<1x1024xf32>
    %15 = math.roundeven %14 : vector<1x1024xf32>
    %cst_4 = arith.constant 0.00784313772 : f32
    %16 = vector.broadcast %cst_4 : f32 to vector<1x1024xf32>
    %17 = arith.mulf %15, %16 : vector<1x1024xf32>
    %cst_5 = arith.constant 1.000000e+00 : f32
    %18 = vector.broadcast %cst_5 : f32 to vector<1x1024xf32>
    %19 = arith.subf %17, %18 : vector<1x1024xf32>
    %c0_6 = arith.constant 0 : index
    %c0_7 = arith.constant 0 : index
    %20 = vector.load %arg1[%c0_6, %c0_7] : memref<1x1024xf32, #tpu.memory_space<vmem>>, vector<1x1024xf32>
    tpu.vector_store %arg1[%c0_6, %c0_7], %19 {strides = array<i32>} : memref<1x1024xf32, #tpu.memory_space<vmem>>, vector<1x1024xf32>,
    return
  }
}

</mosaic_0001>

<llo_original>
// kernel: tpu_custom_call.1
$region0: #{tpu_custom_call.1}
  #allocation0 [shape = 'u32[]', space=smem, size = 0x4, offset = 0x4, fixed_abs, tag = 'smem constant byte address 0x4 - core index']
  #allocation1 [shape = 'u32[144,128]{1,0:T(1,128)}', space=vmem, size = 0x12000, scoped, tag = 'internal scratch']
  %s0 = inlined_call_operand.hbm [shape: f32[1,1024], index: 0, kind: input, shape index: {}]
  %s1 = inlined_call_operand.hbm [shape: f32[1,1024], index: 1, kind: output, shape index: {}]
  %s2 = sld [smem:[#allocation0]]
  $region18: #{tpu_custom_call.1} parent=0
    _
  %s4 = ssub.s32 1, %s2
  %s5 = scalar_select 0, %s4, %s2
  $region1: #{tpu_custom_call.1} parent=0
    #allocation2 [shape = 'u8[4096]{0}', space=vmem, size = 0x1000, scoped, tag = 'input window, operand 0, single buffered']
    #allocation3 [shape = 's32[1]{0}', space=sflag, size = 0x4, scoped, tag = 'scoped memory for tpu_custom_call.1']
    #allocation4 [shape = 's32[1]{0}', space=sflag, size = 0x4, scoped, tag = 'scoped memory for tpu_custom_call.1']
    #allocation5 [shape = 'u8[4096]{0}', space=vmem, size = 0x1000, scoped, tag = 'output window, operand 0, single buffered']
    %6 = vsyncpa [#allocation3], 0
    %7 = vsyncpa [#allocation4], 0
    // Predicated region
    $region2: #{tpu_custom_call.1} parent=1 // pred_check
      _
    $region3: #{tpu_custom_call.1} parent=1 // pred_check_branch
      %9 = sbr.rel (0) target = $region5
    $region4: #{tpu_custom_call.1} parent=1 // pred_region
      %s11 = ssub.s32 128, 128
      %12 = vsyncadd [#allocation3], %s11
      %s14 = sshll.u32 [#allocation2], 4
      %s15 = int_to_ptr.vmem [resolvable:$true] %s14
      %17 = dma.hbm_to_vmem [thread:$0]  %s0, 128, %s15, [#allocation3]
    $region5: #{tpu_custom_call.1} parent=1 // pred_fallthru
      _
    // Predicated region
    $region6: #{tpu_custom_call.1} parent=1 // pred_check
      _
    $region7: #{tpu_custom_call.1} parent=1 // pred_check_branch
      %19 = sbr.rel (0) target = $region9
    $region8: #{tpu_custom_call.1} parent=1 // pred_region
      %20 = dma.done [#allocation3], 128
    $region9: #{tpu_custom_call.1} parent=1 // pred_fallthru
      _
    %v21 = vld [vmem:[#allocation2] sm:$0xff]
    %v22 = vand.u32 2147483647, %v21
    %v23 = vtanh.pop %v22
    %v25 = vlaneseq
    %v26 = vshrl.u32 %v25, 7
    %v27 = vsub.s32 0, %v26
    %v28 = vrot.slane %v23, %v27
    %v29 = vlaneseq
    %v30 = vshrl.u32 %v29, 7
    %v31 = vsub.s32 1, %v30
    %v32 = vrot.slane %v23, %v31
    %v33 = vlaneseq
    %v34 = vshrl.u32 %v33, 7
    %v35 = vsub.s32 2, %v34
    %v36 = vrot.slane %v23, %v35
    %v37 = vlaneseq
    %v38 = vshrl.u32 %v37, 7
    %v39 = vsub.s32 3, %v38
    %v40 = vrot.slane %v23, %v39
    %v41 = vlaneseq
    %v42 = vshrl.u32 %v41, 7
    %v43 = vsub.s32 4, %v42
    %v44 = vrot.slane %v23, %v43
    %v45 = vlaneseq
    %v46 = vshrl.u32 %v45, 7
    %v47 = vsub.s32 5, %v46
    %v48 = vrot.slane %v23, %v47
    %v49 = vlaneseq
    %v50 = vshrl.u32 %v49, 7
    %v51 = vsub.s32 6, %v50
    %v52 = vrot.slane %v23, %v51
    %v53 = vlaneseq
    %v54 = vshrl.u32 %v53, 7
    %v55 = vsub.s32 7, %v54
    %v56 = vrot.slane %v23, %v55
    %vm65 = vcmask 1040384
    %v66 = vsel %vm65, %v28, -inf
    %v67 = vsel %vm65, %v32, -inf
    %v68 = vsel %vm65, %v36, -inf
    %v69 = vsel %vm65, %v40, -inf
    %v70 = vsel %vm65, %v44, -inf
    %v71 = vmax.f32 %v66, %v70
    %v72 = vsel %vm65, %v48, -inf
    %v73 = vmax.f32 %v67, %v72
    %v74 = vsel %vm65, %v52, -inf
    %v75 = vmax.f32 %v68, %v74
    %v76 = vsel %vm65, %v56, -inf
    %v77 = vmax.f32 %v69, %v76
    %v78 = vmax.f32 %v71, %v73
    %v79 = vmax.f32 %v75, %v77
    %v80 = vmax.f32 %v78, %v79
    %81 = vmax.xlane.f32.xlu0 %v80
    %v82 = vpop.xlane.xlu0 %81
    %v83 = vrot.slane %v82, 4
    %v84 = vmax.f32 %v82, %v83
    %v85 = vrot.slane %v84, 2
    %v86 = vmax.f32 %v84, %v85
    %v87 = vrot.slane %v86, 1
    %v88 = vmax.f32 %v86, %v87
    %s89 = vtos %v88
    %v90 = vstv %s89
    %v91 = vrcp.pop %v90
    %s92 = vtos %v91
    %s93 = smul.f32 127.5, %s92
    %v94 = vtanh.pop %v21
    %v95 = vstv %s93
    %v96 = vmul.f32 %v94, %v95
    %v97 = vadd.f32 %v96, 127.5
    %v98 = vround.ne.pseudo %v97
    %v99 = vmul.f32 %v98, 0.007843138
    %v100 = vsub.f32 %v99, 1.0
    %101 = vst [vmem:[#allocation5] sm:$0xff] %v100
    // Predicated region
    $region10: #{tpu_custom_call.1} parent=1 // pred_check
      _
    $region11: #{tpu_custom_call.1} parent=1 // pred_check_branch
      %103 = sbr.rel (0) target = $region13
    $region12: #{tpu_custom_call.1} parent=1 // pred_region
      %s105 = ssub.s32 128, 128
      %106 = vsyncadd [#allocation4], %s105
      %s108 = sshll.u32 [#allocation5], 4
      %s109 = int_to_ptr.vmem [resolvable:$true] %s108
      %111 = dma.vmem_to_hbm [thread:$0]  %s109, 128, %s1, [#allocation4]
    $region13: #{tpu_custom_call.1} parent=1 // pred_fallthru
      _
    // Predicated region
    $region14: #{tpu_custom_call.1} parent=1 // pred_check
      _
    $region15: #{tpu_custom_call.1} parent=1 // pred_check_branch
      %113 = sbr.rel (0) target = $region17
    $region16: #{tpu_custom_call.1} parent=1 // pred_region
      %114 = dma.done [#allocation4], 128
    $region17: #{tpu_custom_call.1} parent=1 // pred_fallthru
      _
    %115 = vsyncpa [#allocation3], 1
    %116 = vsyncpa [#allocation4], 1

</llo_original>
